<compile_context>
chip_gen: v6e
topology: v6e:2x2x1
jax: 0.10.0
libtpu: 0.0.40
codegen_flags: <defaults>
</compile_context>

<pallas_src>
import math
import numpy as np
import jax
import jax.numpy as jnp
from jax import lax
from jax.experimental import pallas as pl
from jax.experimental.pallas import tpu as pltpu

# ----------------------------- model config ---------------------------------
BATCH = 2
SEQ = 8
HIDDEN = 64
N_HEADS = 4
HEAD_DIM = HIDDEN // N_HEADS
INTER = 128
VOCAB = 256
N_LAYERS = 2
LORA_R = 8
N_MODELS = 3               # 1 base + 2 task LoRAs
N_LORA = N_MODELS - 1
EPS = 1e-6
ROPE_THETA = 10000.0


# =========================== Pallas kernels =================================

def lora_merge_kernel(lam_ref, base_t_ref, a_t_ref, b_ref, out_ref):
    """AdaMerging of LoRA adapters into one base weight.

    Grid iterates over the stacked (layer x {q,v}) weights.  Emits the merged
    weight already transposed to [in, out] so the forward kernel can use it
    directly (no XLA transpose of the result).
      W^T = base^T + (sum_i lam_a[i] A_i)^T @ (sum_i lam_b[i] B_i)^T
    """
    m_a_t = jnp.zeros((HIDDEN, LORA_R), jnp.float32)   # merged_A^T : (in, r)
    m_b = jnp.zeros((HIDDEN, LORA_R), jnp.float32)     # merged_B   : (out, r)
    for i in range(N_LORA):                            # static unroll over task models
        m_a_t = m_a_t + lam_ref[0, i] * a_t_ref[0, i]
        m_b = m_b + lam_ref[1, i] * b_ref[0, i]
    # delta^T[in, out] = sum_r A[r, in] * B[out, r]  (contract the rank dims)
    delta_t = lax.dot_general(m_a_t, m_b, (((1,), (1,)), ((), ())),
                              preferred_element_type=jnp.float32)
    out_ref[0] = base_t_ref[0] + delta_t


def merge_lora_all(lam, base_t_stack, a_t_stack, b_stack):
    """One pallas_call for all stacked LoRA merges (avoids per-weight launches)."""
    n = base_t_stack.shape[0]
    return pl.pallas_call(
        lora_merge_kernel,
        out_shape=jax.ShapeDtypeStruct((n, HIDDEN, HIDDEN), jnp.float32),
        grid=(n,),
        in_specs=[
            pl.BlockSpec(memory_space=pltpu.MemorySpace.SMEM),                  # lambdas (2, N_LORA)
            pl.BlockSpec((1, HIDDEN, HIDDEN), lambda g: (g, 0, 0)),             # base^T stack
            pl.BlockSpec((1, N_LORA, HIDDEN, LORA_R), lambda g: (g, 0, 0, 0)),  # A^T stack
            pl.BlockSpec((1, N_LORA, HIDDEN, LORA_R), lambda g: (g, 0, 0, 0)),  # B stack
        ],
        out_specs=pl.BlockSpec((1, HIDDEN, HIDDEN), lambda g: (g, 0, 0)),
        compiler_params=pltpu.CompilerParams(dimension_semantics=("parallel",)),
    )(lam, base_t_stack, a_t_stack, b_stack)


def llama_forward_kernel(x_ref, mask_ref, ln1_ref, wqkv_ref, wo_ref, ln2_ref,
                         wgu_ref, wd_ref, cos_ref, sin_ref, rot_ref,
                         fnorm_ref, wlm_ref, out_ref, x_acc):
    """Fused Llama2 forward: grid = (batch, layer).

    The hidden state lives in the VMEM scratch `x_acc` across the (arbitrary)
    layer axis; the lm_head is fused into the last layer iteration so the only
    HBM output is the lane-dense (SEQ, VOCAB) logits block.
    """
    layer_idx = pl.program_id(1)

    @pl.when(layer_idx == 0)
    def _():                                            # load embeddings once per batch
        x_acc[...] = x_ref[0]

    x = x_acc[...]                                      # (S, H)

    # --- input RMSNorm ---
    var = jnp.mean(x * x, axis=-1, keepdims=True)
    xn = x * lax.rsqrt(var + EPS) * ln1_ref[0]

    # --- fused QKV projection: one matmul with N = 3*H = 192 (lane dense) ---
    qkv = jnp.dot(xn, wqkv_ref[0], preferred_element_type=jnp.float32)   # (S, 3H)

    # --- RoPE on the stacked [q | k] half with ONE (S,2H)@(2H,2H) rot matmul ---
    qk = qkv[:, :2 * HIDDEN]                            # (S, 2H)
    v = qkv[:, 2 * HIDDEN:]                             # (S, H)
    qk = qk * cos_ref[...] + jnp.dot(qk, rot_ref[...],
                                     preferred_element_type=jnp.float32) * sin_ref[...]
    q = qk[:, :HIDDEN]
    k = qk[:, HIDDEN:]

    # --- causal + key-padding mask bias (S, S) ---
    row = lax.broadcasted_iota(jnp.int32, (SEQ, SEQ), 0)
    col = lax.broadcasted_iota(jnp.int32, (SEQ, SEQ), 1)
    keep = jnp.logical_and(col <= row, mask_ref[0] > 0.5)      # (S,S) & (1,S)
    bias = jnp.where(keep, jnp.float32(0.0), jnp.float32(-1e9))

    # --- multi-head attention via per-head lane masks (mask only k and v) ---
    scale = 1.0 / math.sqrt(HEAD_DIM)
    head_id = lax.broadcasted_iota(jnp.int32, (1, HIDDEN), 1) // HEAD_DIM
    attn = jnp.zeros((SEQ, HIDDEN), jnp.float32)
    for h in range(N_HEADS):                            # static unroll
        mh = (head_id == h).astype(jnp.float32)         # (1, H)
        km = k * mh
        vm = v * mh
        s = lax.dot_general(q, km, (((1,), (1,)), ((), ())),
                            preferred_element_type=jnp.float32) * scale + bias
        s = s - jnp.max(s, axis=-1, keepdims=True)
        p = jnp.exp(s)
        p = p * pl.reciprocal(jnp.sum(p, axis=-1, keepdims=True), approx=True)
        attn = attn + jnp.dot(p, vm, preferred_element_type=jnp.float32)

    x = x + jnp.dot(attn, wo_ref[0], preferred_element_type=jnp.float32)

    # --- post-attention RMSNorm + fused SwiGLU MLP (gate|up in one N=256 matmul) ---
    var2 = jnp.mean(x * x, axis=-1, keepdims=True)
    xn2 = x * lax.rsqrt(var2 + EPS) * ln2_ref[0]
    gu = jnp.dot(xn2, wgu_ref[0], preferred_element_type=jnp.float32)    # (S, 2*INTER)
    g = gu[:, :INTER]
    u = gu[:, INTER:]
    x = x + jnp.dot(g * jax.nn.sigmoid(g) * u, wd_ref[0],
                    preferred_element_type=jnp.float32)

    x_acc[...] = x                                      # carry to the next layer

    # --- final RMSNorm + lm_head, fused into the last layer iteration ---
    @pl.when(layer_idx == pl.num_programs(1) - 1)
    def _():
        varf = jnp.mean(x * x, axis=-1, keepdims=True)
        xf = x * lax.rsqrt(varf + EPS) * fnorm_ref[...]
        out_ref[0] = jnp.dot(xf, wlm_ref[...], preferred_element_type=jnp.float32)


def llama_forward(x_emb, mask3, stacks, cos_qk, sin_qk, rot_qk, final_norm, wlm_t):
    b_ = x_emb.shape[0]
    per_batch = lambda shape: pl.BlockSpec(shape, lambda b, l: (b, 0, 0))
    per_layer = lambda shape: pl.BlockSpec(shape, lambda b, l: (l, 0, 0))
    shared = lambda shape: pl.BlockSpec(shape, lambda b, l: tuple(0 for _ in shape))
    return pl.pallas_call(
        llama_forward_kernel,
        out_shape=jax.ShapeDtypeStruct((b_, SEQ, VOCAB), jnp.float32),
        grid=(b_, N_LAYERS),
        in_specs=[
            per_batch((1, SEQ, HIDDEN)),                 # token embeddings
            per_batch((1, 1, SEQ)),                      # attention mask
            per_layer((1, 1, HIDDEN)),                   # ln1 stack
            per_layer((1, HIDDEN, 3 * HIDDEN)),          # fused [Wq|Wk|Wv]^T stack
            per_layer((1, HIDDEN, HIDDEN)),              # Wo^T stack
            per_layer((1, 1, HIDDEN)),                   # ln2 stack
            per_layer((1, HIDDEN, 2 * INTER)),           # fused [Wg|Wu]^T stack
            per_layer((1, INTER, HIDDEN)),               # Wd^T stack
            shared((SEQ, 2 * HIDDEN)),                   # cos for stacked [q|k]
            shared((SEQ, 2 * HIDDEN)),                   # sin for stacked [q|k]
            shared((2 * HIDDEN, 2 * HIDDEN)),            # rotate-half matrix
            shared((1, HIDDEN)),                         # final RMSNorm weight
            shared((HIDDEN, VOCAB)),                     # lm_head^T
        ],
        out_specs=pl.BlockSpec((1, SEQ, VOCAB), lambda b, l: (b, 0, 0)),
        scratch_shapes=[pltpu.VMEM((SEQ, HIDDEN), jnp.float32)],
        compiler_params=pltpu.CompilerParams(
            dimension_semantics=("parallel", "arbitrary")),
    )(x_emb, mask3, stacks["ln1"], stacks["wqkvT"], stacks["woT"], stacks["ln2"],
      stacks["wguT"], stacks["wdT"], cos_qk, sin_qk, rot_qk, final_norm, wlm_t)


# ============================ glue / setup ===================================

def build_rope():
    half = HEAD_DIM // 2
    inv_freq = 1.0 / (ROPE_THETA ** (np.arange(0, HEAD_DIM, 2, dtype=np.float32) / HEAD_DIM))
    t = np.arange(SEQ, dtype=np.float32)
    freqs = np.outer(t, inv_freq)                             # (S, hd/2)
    emb = np.concatenate([freqs, freqs], axis=-1)             # (S, hd)
    cos_hd = np.cos(emb)
    sin_hd = np.sin(emb)
    # stacked [q | k] layout: 2*N_HEADS contiguous head blocks of HEAD_DIM lanes
    cos_qk = np.tile(cos_hd, (1, 2 * N_HEADS))                # (S, 2H) = (8, 128)
    sin_qk = np.tile(sin_hd, (1, 2 * N_HEADS))
    # rotate_half as a right-multiply permutation/sign matrix, per-head block-diag
    r_head = np.zeros((HEAD_DIM, HEAD_DIM), np.float32)
    for i in range(half):
        r_head[i, i + half] = 1.0       # out[i+half] =  x[i]
        r_head[i + half, i] = -1.0      # out[i]      = -x[i+half]
    rot_qk = np.kron(np.eye(2 * N_HEADS, dtype=np.float32), r_head)   # (2H, 2H)
    return (jnp.asarray(cos_qk), jnp.asarray(sin_qk), jnp.asarray(rot_qk),
            jnp.asarray(cos_hd), jnp.asarray(sin_hd))


def init_params(key):
    """Deterministic synthetic base model + 2 LoRA task models (shapes from __init__)."""
    def nrm(k, shape, scale=0.02):
        return scale * jax.random.normal(k, shape, jnp.float32)

    keys = iter(jax.random.split(key, 256))
    base = {
        "embed": nrm(next(keys), (VOCAB, HIDDEN)),
        "final_norm": jnp.ones((1, HIDDEN), jnp.float32),
        "lm_head": nrm(next(keys), (VOCAB, HIDDEN)),           # [out, in]
        "layers": [],
    }
    loras = []   # per layer: stacked A/B for q_proj and v_proj
    for _ in range(N_LAYERS):
        layer = {
            "ln1": jnp.ones((1, HIDDEN), jnp.float32),
            "q":   nrm(next(keys), (HIDDEN, HIDDEN)),          # [out, in]
            "k":   nrm(next(keys), (HIDDEN, HIDDEN)),
            "v":   nrm(next(keys), (HIDDEN, HIDDEN)),
            "o":   nrm(next(keys), (HIDDEN, HIDDEN)),
            "ln2": jnp.ones((1, HIDDEN), jnp.float32),
            "g":   nrm(next(keys), (INTER, HIDDEN)),
            "u":   nrm(next(keys), (INTER, HIDDEN)),
            "d":   nrm(next(keys), (HIDDEN, INTER)),
        }
        base["layers"].append(layer)
        loras.append({
            "qA": nrm(next(keys), (N_LORA, LORA_R, HIDDEN), 0.05),
            "qB": nrm(next(keys), (N_LORA, HIDDEN, LORA_R), 0.05),
            "vA": nrm(next(keys), (N_LORA, LORA_R, HIDDEN), 0.05),
            "vB": nrm(next(keys), (N_LORA, HIDDEN, LORA_R), 0.05),
        })
    return base, loras


def ada_merge_and_prepare(base, loras, lambdas_raw):
    """AdaMergingLlama2.load_weights(): clamp lambdas, merge LoRA into q/v (one
    batched Pallas call), then build fused/stacked [in,out] weights for forward."""
    lam = jnp.clip(lambdas_raw, 0.0, 1.0)                      # lambdas(): (2, N_LORA)

    base_t_list, a_t_list, b_list = [], [], []
    for layer, lr in zip(base["layers"], loras):
        for w_key, a_key, b_key in (("q", "qA", "qB"), ("v", "vA", "vB")):
            base_t_list.append(layer[w_key].T)                 # (in, out)
            a_t_list.append(jnp.swapaxes(lr[a_key], 1, 2))     # (nL, in, r)
            b_list.append(lr[b_key])                           # (nL, out, r)
    merged_t = merge_lora_all(lam, jnp.stack(base_t_list),
                              jnp.stack(a_t_list), jnp.stack(b_list))   # (2L, H, H)

    layers = []
    stacks = {k: [] for k in ("ln1", "wqkvT", "woT", "ln2", "wguT", "wdT")}
    for li, layer in enumerate(base["layers"]):
        wqT = merged_t[2 * li]
        wvT = merged_t[2 * li + 1]
        wkT = layer["k"].T
        woT = layer["o"].T
        wgT = layer["g"].T
        wuT = layer["u"].T
        wdT = layer["d"].T
        layers.append(dict(ln1=layer["ln1"], wqT=wqT, wkT=wkT, wvT=wvT, woT=woT,
                           ln2=layer["ln2"], wgT=wgT, wuT=wuT, wdT=wdT))
        stacks["ln1"].append(layer["ln1"])
        stacks["wqkvT"].append(jnp.concatenate([wqT, wkT, wvT], axis=-1))   # (H, 3H)
        stacks["woT"].append(woT)
        stacks["ln2"].append(layer["ln2"])
        stacks["wguT"].append(jnp.concatenate([wgT, wuT], axis=-1))         # (H, 2I)
        stacks["wdT"].append(wdT)
    stacks = {k: jnp.stack(v, axis=0) for k, v in stacks.items()}

    return {
        "embed": base["embed"],
        "final_norm": base["final_norm"],
        "lm_head_T": base["lm_head"].T,
        "layers": layers,          # per-layer standard weights (used by the reference)
        "stacks": stacks,          # fused, layer-stacked weights for the Pallas kernel
    }


def forward(input_ids, attention_mask, merged, cos_qk, sin_qk, rot_qk):
    """AdaMergingLlama2.forward(): Llama2 causal-LM logits (B, S, V)."""
    # Embedding gather kept as plain-JAX glue (data-dependent gather).
    x = merged["embed"][input_ids]                             # (B, S, H)
    mask3 = attention_mask.astype(jnp.float32)[:, None, :]     # (B, 1, S)
    return llama_forward(x, mask3, merged["stacks"], cos_qk, sin_qk, rot_qk,
                         merged["final_norm"], merged["lm_head_T"])
    # TODO(synk): model_structure.generate(...) path (autoregressive decode loop)
    # is not implemented; only the logits forward is reproduced.


# ============================ pure-JAX reference =============================

def ref_rms(x, w):
    return x * lax.rsqrt(jnp.mean(x * x, axis=-1, keepdims=True) + EPS) * w


def ref_rope(t, cos_hd, sin_hd):
    half = HEAD_DIM // 2
    t1, t2 = t[..., :half], t[..., half:]
    rot = jnp.concatenate([-t2, t1], axis=-1)
    return t * cos_hd[None, None] + rot * sin_hd[None, None]


def ref_forward(input_ids, attention_mask, merged, cos_hd, sin_hd):
    x = merged["embed"][input_ids]
    b_, s_ = input_ids.shape
    row = jnp.arange(s_)[:, None]
    col = jnp.arange(s_)[None, :]
    keep = jnp.logical_and((col <= row)[None], attention_mask[:, None, :] > 0.5)
    bias = jnp.where(keep, 0.0, -1e9)                          # (B, S, S)
    scale = 1.0 / math.sqrt(HEAD_DIM)
    for lp in merged["layers"]:
        xn = ref_rms(x, lp["ln1"])
        q = xn @ lp["wqT"]
        k = xn @ lp["wkT"]
        v = xn @ lp["wvT"]
        qh = q.reshape(b_, s_, N_HEADS, HEAD_DIM).transpose(0, 2, 1, 3)
        kh = k.reshape(b_, s_, N_HEADS, HEAD_DIM).transpose(0, 2, 1, 3)
        vh = v.reshape(b_, s_, N_HEADS, HEAD_DIM).transpose(0, 2, 1, 3)
        qh = ref_rope(qh, cos_hd, sin_hd)
        kh = ref_rope(kh, cos_hd, sin_hd)
        s = jnp.einsum("bhqd,bhkd->bhqk", qh, kh) * scale + bias[:, None]
        p = jax.nn.softmax(s, axis=-1)
        o = jnp.einsum("bhqk,bhkd->bhqd", p, vh).transpose(0, 2, 1, 3).reshape(b_, s_, HIDDEN)
        x = x + o @ lp["woT"]
        xn2 = ref_rms(x, lp["ln2"])
        g = xn2 @ lp["wgT"]
        u = xn2 @ lp["wuT"]
        x = x + (g * jax.nn.sigmoid(g) * u) @ lp["wdT"]
    return ref_rms(x, merged["final_norm"]) @ merged["lm_head_T"]


# ================================== main =====================================

if __name__ == "__main__":
    key = jax.random.PRNGKey(0)
    k_par, k_ids = jax.random.split(key)

    base, loras = init_params(k_par)
    # nn.Parameter(torch.ones(2, n_models-1) * 0.3), then clamp(0, 1)
    lambdas_raw = 0.3 * jnp.ones((2, N_LORA), jnp.float32)

    cos_qk, sin_qk, rot_qk, cos_hd, sin_hd = build_rope()
    merged = ada_merge_and_prepare(base, loras, lambdas_raw)

    # sanity-check the batched Pallas LoRA merge against plain JAX
    lam = jnp.clip(lambdas_raw, 0.0, 1.0)
    ref_wq0 = base["layers"][0]["q"] + (
        jnp.einsum("n,nor->or", lam[1], loras[0]["qB"])
        @ jnp.einsum("n,nri->ri", lam[0], loras[0]["qA"])
    )
    assert np.allclose(np.asarray(merged["layers"][0]["wqT"]), np.asarray(ref_wq0.T),
                       atol=1e-5, rtol=1e-5), "LoRA merge kernel mismatch"

    input_ids = jax.random.randint(k_ids, (BATCH, SEQ), 0, VOCAB, dtype=jnp.int32)
    attention_mask = jnp.ones((BATCH, SEQ), jnp.float32).at[1, -1].set(0.0)

    logits = forward(input_ids, attention_mask, merged, cos_qk, sin_qk, rot_qk)
    logits = jax.block_until_ready(logits)

    ref = ref_forward(input_ids, attention_mask, merged, cos_hd, sin_hd)
    assert logits.shape == (BATCH, SEQ, VOCAB)
    assert np.allclose(np.asarray(logits), np.asarray(ref), atol=2e-3, rtol=2e-3), \
        "forward kernel mismatch vs pure-JAX reference"

    print("KERNEL_OK")
</pallas_src>

<mosaic_0001>
module attributes {stable_mosaic.version = 11 : i64} {
  func.func @lora_merge_kernel(%arg0: i32, %arg1: memref<2x2xf32, #tpu.memory_space<smem>>, %arg2: memref<1x64x64xf32, #tpu.memory_space<vmem>>, %arg3: memref<1x2x64x8xf32, #tpu.memory_space<vmem>>, %arg4: memref<1x2x64x8xf32, #tpu.memory_space<vmem>>, %arg5: memref<1x64x64xf32, #tpu.memory_space<vmem>>) attributes {dimension_semantics = [#tpu.dimension_semantics<parallel>], iteration_bounds = array<i64: 4>, scalar_prefetch = 0 : i64, scratch_operands = 0 : i64, tpu.core_type = #tpu.core_type<tc>, window_params = [{transform_indices = @transform_0, window_bounds = array<i64: 2, 2>}, {transform_indices = @transform_1, window_bounds = array<i64: 1, 64, 64>}, {transform_indices = @transform_2, window_bounds = array<i64: 1, 2, 64, 8>}, {transform_indices = @transform_3, window_bounds = array<i64: 1, 2, 64, 8>}, {transform_indices = @transform_4, window_bounds = array<i64: 1, 64, 64>}]} {
    %cst = arith.constant 0.000000e+00 : f32
    %0 = vector.broadcast %cst : f32 to vector<64x8xf32>
    %cst_0 = arith.constant 0.000000e+00 : f32
    %1 = vector.broadcast %cst_0 : f32 to vector<64x8xf32>
    %c0 = arith.constant 0 : index
    %c0_1 = arith.constant 0 : index
    %2 = memref.load %arg1[%c0, %c0_1] : memref<2x2xf32, #tpu.memory_space<smem>>
    %c0_2 = arith.constant 0 : index
    %c0_3 = arith.constant 0 : index
    %c0_4 = arith.constant 0 : index
    %c0_5 = arith.constant 0 : index
    %3 = vector.load %arg3[%c0_2, %c0_3, %c0_4, %c0_5] : memref<1x2x64x8xf32, #tpu.memory_space<vmem>>, vector<1x1x64x8xf32>
    %4 = vector.shape_cast %3 : vector<1x1x64x8xf32> to vector<64x8xf32>
    %5 = vector.broadcast %2 : f32 to vector<64x8xf32>
    %6 = arith.mulf %5, %4 : vector<64x8xf32>
    %7 = arith.addf %0, %6 : vector<64x8xf32>
    %c1 = arith.constant 1 : index
    %c0_6 = arith.constant 0 : index
    %8 = memref.load %arg1[%c1, %c0_6] : memref<2x2xf32, #tpu.memory_space<smem>>
    %c0_7 = arith.constant 0 : index
    %c0_8 = arith.constant 0 : index
    %c0_9 = arith.constant 0 : index
    %c0_10 = arith.constant 0 : index
    %9 = vector.load %arg4[%c0_7, %c0_8, %c0_9, %c0_10] : memref<1x2x64x8xf32, #tpu.memory_space<vmem>>, vector<1x1x64x8xf32>
    %10 = vector.shape_cast %9 : vector<1x1x64x8xf32> to vector<64x8xf32>
    %11 = vector.broadcast %8 : f32 to vector<64x8xf32>
    %12 = arith.mulf %11, %10 : vector<64x8xf32>
    %13 = arith.addf %1, %12 : vector<64x8xf32>
    %c0_11 = arith.constant 0 : index
    %c1_12 = arith.constant 1 : index
    %14 = memref.load %arg1[%c0_11, %c1_12] : memref<2x2xf32, #tpu.memory_space<smem>>
    %c0_13 = arith.constant 0 : index
    %c1_14 = arith.constant 1 : index
    %c0_15 = arith.constant 0 : index
    %c0_16 = arith.constant 0 : index
    %15 = vector.load %arg3[%c0_13, %c1_14, %c0_15, %c0_16] : memref<1x2x64x8xf32, #tpu.memory_space<vmem>>, vector<1x1x64x8xf32>
    %16 = vector.shape_cast %15 : vector<1x1x64x8xf32> to vector<64x8xf32>
    %17 = vector.broadcast %14 : f32 to vector<64x8xf32>
    %18 = arith.mulf %17, %16 : vector<64x8xf32>
    %19 = arith.addf %7, %18 : vector<64x8xf32>
    %c1_17 = arith.constant 1 : index
    %c1_18 = arith.constant 1 : index
    %20 = memref.load %arg1[%c1_17, %c1_18] : memref<2x2xf32, #tpu.memory_space<smem>>
    %c0_19 = arith.constant 0 : index
    %c1_20 = arith.constant 1 : index
    %c0_21 = arith.constant 0 : index
    %c0_22 = arith.constant 0 : index
    %21 = vector.load %arg4[%c0_19, %c1_20, %c0_21, %c0_22] : memref<1x2x64x8xf32, #tpu.memory_space<vmem>>, vector<1x1x64x8xf32>
    %22 = vector.shape_cast %21 : vector<1x1x64x8xf32> to vector<64x8xf32>
    %23 = vector.broadcast %20 : f32 to vector<64x8xf32>
    %24 = arith.mulf %23, %22 : vector<64x8xf32>
    %25 = arith.addf %13, %24 : vector<64x8xf32>
    %cst_23 = arith.constant dense<0.000000e+00> : vector<64x64xf32>
    %26 = tpu.matmul %19, %25, %cst_23 {dimension_numbers = #tpu.dot_dimension_numbers<[1], [1], [0], [0], [0, 0, 1, 0], [], []>} : vector<64x8xf32>, vector<64x8xf32>, vector<64x64xf32> -> vector<64x64xf32>
    %c0_24 = arith.constant 0 : index
    %c0_25 = arith.constant 0 : index
    %c0_26 = arith.constant 0 : index
    %27 = vector.load %arg2[%c0_24, %c0_25, %c0_26] : memref<1x64x64xf32, #tpu.memory_space<vmem>>, vector<1x64x64xf32>
    %28 = vector.shape_cast %27 : vector<1x64x64xf32> to vector<64x64xf32>
    %29 = arith.addf %28, %26 : vector<64x64xf32>
    %c0_27 = arith.constant 0 : index
    %c0_28 = arith.constant 0 : index
    %c0_29 = arith.constant 0 : index
    %30 = vector.load %arg5[%c0_27, %c0_28, %c0_29] : memref<1x64x64xf32, #tpu.memory_space<vmem>>, vector<1x64x64xf32>
    %31 = vector.shape_cast %30 : vector<1x64x64xf32> to vector<64x64xf32>
    %32 = vector.shape_cast %29 : vector<64x64xf32> to vector<1x64x64xf32>
    tpu.vector_store %arg5[%c0_27, %c0_28, %c0_29], %32 {strides = array<i32>} : memref<1x64x64xf32, #tpu.memory_space<vmem>>, vector<1x64x64xf32>,
    return
  }
  func.func @transform_0(%arg0: i32) -> (i32, i32) {
    %c0_i32 = arith.constant 0 : i32
    %c0_i32_0 = arith.constant 0 : i32
    %c0_i32_1 = arith.constant 0 : i32
    return %c0_i32, %c0_i32_0 : i32, i32
  }
  func.func @transform_1(%arg0: i32) -> (i32, i32, i32) {
    %c0_i32 = arith.constant 0 : i32
    %c0_i32_0 = arith.constant 0 : i32
    %c0_i32_1 = arith.constant 0 : i32
    return %arg0, %c0_i32, %c0_i32_0 : i32, i32, i32
  }
  func.func @transform_2(%arg0: i32) -> (i32, i32, i32, i32) {
    %c0_i32 = arith.constant 0 : i32
    %c0_i32_0 = arith.constant 0 : i32
    %c0_i32_1 = arith.constant 0 : i32
    %c0_i32_2 = arith.constant 0 : i32
    return %arg0, %c0_i32, %c0_i32_0, %c0_i32_1 : i32, i32, i32, i32
  }
  func.func @transform_3(%arg0: i32) -> (i32, i32, i32, i32) {
    %c0_i32 = arith.constant 0 : i32
    %c0_i32_0 = arith.constant 0 : i32
    %c0_i32_1 = arith.constant 0 : i32
    %c0_i32_2 = arith.constant 0 : i32
    return %arg0, %c0_i32, %c0_i32_0, %c0_i32_1 : i32, i32, i32, i32
  }
  func.func @transform_4(%arg0: i32) -> (i32, i32, i32) {
    %c0_i32 = arith.constant 0 : i32
    %c0_i32_0 = arith.constant 0 : i32
    %c0_i32_1 = arith.constant 0 : i32
    return %arg0, %c0_i32, %c0_i32_0 : i32, i32, i32
  }
}

</mosaic_0001>

<llo_original>
// kernel: tpu_custom_call.1
$region0: #{tpu_custom_call.1}
  #allocation0 [shape = 'u32[]', space=smem, size = 0x4, offset = 0x4, fixed_abs, tag = 'smem constant byte address 0x4 - core index']
  #allocation1 [shape = 'u32[144,128]{1,0:T(1,128)}', space=vmem, size = 0x12000, scoped, tag = 'internal scratch']
  %s0 = inlined_call_operand.vmem [shape: f32[2,2], index: 0, kind: input, shape index: {}]
  %s1 = inlined_call_operand.vmem [shape: f32[4,64,64], index: 1, kind: input, shape index: {}]
  %s2 = inlined_call_operand.vmem [shape: f32[4,2,64,8], index: 2, kind: input, shape index: {}]
  %s3 = inlined_call_operand.vmem [shape: f32[4,2,64,8], index: 3, kind: input, shape index: {}]
  %s4 = inlined_call_operand.hbm [shape: f32[4,64,64], index: 4, kind: output, shape index: {}]
  %s5 = sld [smem:[#allocation0]]
  $region53: #{tpu_custom_call.1} parent=0
    _
  %s7 = ssub.s32 1, %s5
  %s8 = scalar_select 0, %s7, %s5
  $region1: #{tpu_custom_call.1} parent=0
    #allocation2 [shape = 'u8[1024]{0}', space=smem, size = 0x400, scoped, tag = 'input window, operand 0, single buffered']
    #allocation3 [shape = 's32[2]{0}', space=sflag, size = 0x8, scoped, tag = 'scoped memory for tpu_custom_call.1']
    #allocation4 [shape = 's32[2]{0}', space=sflag, size = 0x8, scoped, tag = 'scoped memory for tpu_custom_call.1']
    #allocation5 [shape = 'u8[65536]{0}', space=vmem, size = 0x10000, scoped, tag = 'output window, operand 0']
    %9 = vsyncpa [#allocation4], 0
    %10 = vsyncpa [#allocation3], 0
    %s11 = scalar_lea.sflag [#allocation3], 1
    %12 = vsyncpa %s11, 0
    loop: start=0, step=1, limit=6
    $region2: #{tpu_custom_call.1} parent=1 // loop_pre_header
      _
    $region3: #{tpu_custom_call.1} parent=1 // loop_header
      %s14 = sphi 0, %s18
      %p15 = scmp.ge.s32.totalorder %s14, 6
      %s22 = sphi 0, %s22
      %s24 = sphi 0, %s22
      %s25 = sphi 0, %s24
      %s39 = sphi 0, %s25
      %s45 = sphi 0, %s47
      %s48 = sphi 0, %s45
      %s49 = sphi 0, %s48
      %s65 = sphi 0, %s49
      %s71 = sphi 0, %s73
      %s74 = sphi 0, %s71
      %s75 = sphi 0, %s74
      %s91 = sphi 0, %s75
      %s97 = sphi 0, %s99
      %s100 = sphi 0, %s97
      %s101 = sphi 0, %s100
      %s117 = sphi 0, %s101
      %s123 = sphi 0, %s125
      %s126 = sphi 0, %s123
      %s127 = sphi 0, %s126
      %s143 = sphi 0, %s127
    $region4: #{tpu_custom_call.1} parent=1 // loop_header_branch
      %17 = sbr.rel (%p15) target = $region8
    $region5: #{tpu_custom_call.1} parent=1 // loop_body
      %s19 = ssub.s32 %s14, 1
      %s20 = ssub.s32 %s14, 2
      %s21 = sadd.s32 %s14, 1
      %s23 = sadd.s32 %s22, 1
      %p26 = scmp.eq.s32.totalorder %s14, 3
      %p27 = scmp.ne.s32.totalorder %s22, %s24
      %p28 = scmp.eq.s32.totalorder %s14, 0
      %p29 = por %p27, %p28
      %p30 = scmp.ne.s32.totalorder %s22, %s24
      %p31 = scmp.eq.s32.totalorder %s19, 3
      %p32 = por %p30, %p31
      %p33 = scmp.ne.s32.totalorder %s24, %s25
      %p34 = scmp.eq.s32.totalorder %s19, 0
      %p35 = por %p33, %p34
      %p36 = scmp.ne.s32.totalorder %s24, %s25
      %p37 = scmp.eq.s32.totalorder %s20, 3
      %p38 = por %p36, %p37
      %p40 = scmp.ne.s32.totalorder %s25, %s39
      %p41 = scmp.eq.s32.totalorder %s20, 0
      %p42 = por %p40, %p41
      %s43 = ssub.s32 %s14, %s21
      %p44 = scmp.eq.s32.totalorder %s43, 0
      %s46 = sadd.s32 %s45, 1
      %s47 = scalar_select %p44, %s45, %s46
      %p50 = pneg %p44
      %p51 = scmp.eq.s32.totalorder %s14, 3
      %p52 = por %p50, %p51
      %p53 = scmp.ne.s32.totalorder %s45, %s48
      %p54 = scmp.eq.s32.totalorder %s14, 0
      %p55 = por %p53, %p54
      %p56 = scmp.ne.s32.totalorder %s45, %s48
      %p57 = scmp.eq.s32.totalorder %s19, 3
      %p58 = por %p56, %p57
      %p59 = scmp.ne.s32.totalorder %s48, %s49
      %p60 = scmp.eq.s32.totalorder %s19, 0
      %p61 = por %p59, %p60
      %p62 = scmp.ne.s32.totalorder %s48, %s49
      %p63 = scmp.eq.s32.totalorder %s20, 3
      %p64 = por %p62, %p63
      %p66 = scmp.ne.s32.totalorder %s49, %s65
      %p67 = scmp.eq.s32.totalorder %s20, 0
      %p68 = por %p66, %p67
      %s69 = ssub.s32 %s14, %s21
      %p70 = scmp.eq.s32.totalorder %s69, 0
      %s72 = sadd.s32 %s71, 1
      %s73 = scalar_select %p70, %s71, %s72
      %p76 = pneg %p70
      %p77 = scmp.eq.s32.totalorder %s14, 3
      %p78 = por %p76, %p77
      %p79 = scmp.ne.s32.totalorder %s71, %s74
      %p80 = scmp.eq.s32.totalorder %s14, 0
      %p81 = por %p79, %p80
      %p82 = scmp.ne.s32.totalorder %s71, %s74
      %p83 = scmp.eq.s32.totalorder %s19, 3
      %p84 = por %p82, %p83
      %p85 = scmp.ne.s32.totalorder %s74, %s75
      %p86 = scmp.eq.s32.totalorder %s19, 0
      %p87 = por %p85, %p86
      %p88 = scmp.ne.s32.totalorder %s74, %s75
      %p89 = scmp.eq.s32.totalorder %s20, 3
      %p90 = por %p88, %p89
      %p92 = scmp.ne.s32.totalorder %s75, %s91
      %p93 = scmp.eq.s32.totalorder %s20, 0
      %p94 = por %p92, %p93
      %s95 = ssub.s32 %s14, %s21
      %p96 = scmp.eq.s32.totalorder %s95, 0
      %s98 = sadd.s32 %s97, 1
      %s99 = scalar_select %p96, %s97, %s98
      %p102 = pneg %p96
      %p103 = scmp.eq.s32.totalorder %s14, 3
      %p104 = por %p102, %p103
      %p105 = scmp.ne.s32.totalorder %s97, %s100
      %p106 = scmp.eq.s32.totalorder %s14, 0
      %p107 = por %p105, %p106
      %p108 = scmp.ne.s32.totalorder %s97, %s100
      %p109 = scmp.eq.s32.totalorder %s19, 3
      %p110 = por %p108, %p109
      %p111 = scmp.ne.s32.totalorder %s100, %s101
      %p112 = scmp.eq.s32.totalorder %s19, 0
      %p113 = por %p111, %p112
      %p114 = scmp.ne.s32.totalorder %s100, %s101
      %p115 = scmp.eq.s32.totalorder %s20, 3
      %p116 = por %p114, %p115
      %p118 = scmp.ne.s32.totalorder %s101, %s117
      %p119 = scmp.eq.s32.totalorder %s20, 0
      %p120 = por %p118, %p119
      %s121 = ssub.s32 %s14, %s21
      %p122 = scmp.eq.s32.totalorder %s121, 0
      %s124 = sadd.s32 %s123, 1
      %s125 = scalar_select %p122, %s123, %s124
      %p128 = pneg %p122
      %p129 = scmp.eq.s32.totalorder %s14, 3
      %p130 = por %p128, %p129
      %p131 = scmp.ne.s32.totalorder %s123, %s126
      %p132 = scmp.eq.s32.totalorder %s14, 0
      %p133 = por %p131, %p132
      %p134 = scmp.ne.s32.totalorder %s123, %s126
      %p135 = scmp.eq.s32.totalorder %s19, 3
      %p136 = por %p134, %p135
      %p137 = scmp.ne.s32.totalorder %s126, %s127
      %p138 = scmp.eq.s32.totalorder %s19, 0
      %p139 = por %p137, %p138
      %p140 = scmp.ne.s32.totalorder %s126, %s127
      %p141 = scmp.eq.s32.totalorder %s20, 3
      %p142 = por %p140, %p141
      %p144 = scmp.ne.s32.totalorder %s127, %s143
      %p145 = scmp.eq.s32.totalorder %s20, 0
      %p146 = por %p144, %p145
      %p147 = scmp.le.s32.totalorder 1, %s14
      %p148 = scmp.lt.s32.totalorder %s14, 5
      %p149 = pnand %p147, %p148
      %p150 = pneg %p149
      // Predicated region
      $region9: #{tpu_custom_call.1} parent=5 // pred_check
        _
      $region10: #{tpu_custom_call.1} parent=5 // pred_check_branch
        %152 = sbr.rel (%p149) target = $region12
      $region11: #{tpu_custom_call.1} parent=5 // pred_region
        %s153 = ssub.s32 %s14, 1
        // Predicated region
        $region13: #{tpu_custom_call.1} parent=11 // pred_check
          %p154 = pneg %p35
        $region14: #{tpu_custom_call.1} parent=11 // pred_check_branch
          %156 = sbr.rel (%p154) target = $region16
        $region15: #{tpu_custom_call.1} parent=11 // pred_region
          %s158 = ssub.s32 32, 32
          %159 = vsyncadd [#allocation4], %s158
          %s161 = sshll.u32 %s0, 4
          %s162 = int_to_ptr.vmem [resolvable:$true] %s161
          %164 = dma.vmem_to_smem %s162, 32, [#allocation2], [#allocation4]
        $region16: #{tpu_custom_call.1} parent=11 // pred_fallthru
          _
      $region12: #{tpu_custom_call.1} parent=5 // pred_fallthru
        _
      %p165 = scmp.lt.s32.totalorder %s14, 4
      // Predicated region
      $region17: #{tpu_custom_call.1} parent=5 // pred_check
        %p166 = pneg %p165
      $region18: #{tpu_custom_call.1} parent=5 // pred_check_branch
        %168 = sbr.rel (%p166) target = $region20
      $region19: #{tpu_custom_call.1} parent=5 // pred_region
        // Predicated region
        $region21: #{tpu_custom_call.1} parent=19 // pred_check
          %p169 = pneg %p55
        $region22: #{tpu_custom_call.1} parent=19 // pred_check_branch
          %171 = sbr.rel (%p169) target = $region24
        $region23: #{tpu_custom_call.1} parent=19 // pred_region
          %p172 = scmp.lt.s32.totalorder %s14, 3
          %s173 = scalar_select %p172, %s14, 3
          %s174 = smul.addr %s173, 8
          %s175 = smul.addr %s174, 8
          %s176 = scalar_lea.vmem %s1, %s175
        $region24: #{tpu_custom_call.1} parent=19 // pred_fallthru
          _
        // Predicated region
        $region25: #{tpu_custom_call.1} parent=19 // pred_check
          %p177 = pneg %p81
        $region26: #{tpu_custom_call.1} parent=19 // pred_check_branch
          %179 = sbr.rel (%p177) target = $region28
        $region27: #{tpu_custom_call.1} parent=19 // pred_region
          %p180 = scmp.lt.s32.totalorder %s14, 3
          %s181 = scalar_select %p180, %s14, 3
          %s182 = smul.addr %s181, 16
          %s183 = smul.addr %s182, 8
          %s184 = scalar_lea.vmem %s2, %s183
        $region28: #{tpu_custom_call.1} parent=19 // pred_fallthru
          _
        // Predicated region
        $region29: #{tpu_custom_call.1} parent=19 // pred_check
          %p185 = pneg %p107
        $region30: #{tpu_custom_call.1} parent=19 // pred_check_branch
          %187 = sbr.rel (%p185) target = $region32
        $region31: #{tpu_custom_call.1} parent=19 // pred_region
          %p188 = scmp.lt.s32.totalorder %s14, 3
          %s189 = scalar_select %p188, %s14, 3
          %s190 = smul.addr %s189, 16
          %s191 = smul.addr %s190, 8
          %s192 = scalar_lea.vmem %s3, %s191
        $region32: #{tpu_custom_call.1} parent=19 // pred_fallthru
          _
      $region20: #{tpu_custom_call.1} parent=5 // pred_fallthru
        _
      %p193 = scmp.le.s32.totalorder 1, %s14
      %p194 = scmp.lt.s32.totalorder %s14, 5
      %p195 = pnand %p193, %p194
      %p196 = pneg %p195
      // Predicated region
      $region33: #{tpu_custom_call.1} parent=5 // pred_check
        _
      $region34: #{tpu_custom_call.1} parent=5 // pred_check_branch
        %198 = sbr.rel (%p195) target = $region36
      $region35: #{tpu_custom_call.1} parent=5 // pred_region
        %s199 = ssub.s32 %s14, 1
        // Predicated region
        $region37: #{tpu_custom_call.1} parent=35 // pred_check
          %p200 = pneg %p35
        $region38: #{tpu_custom_call.1} parent=35 // pred_check_branch
          %202 = sbr.rel (%p200) target = $region40
        $region39: #{tpu_custom_call.1} parent=35 // pred_region
          %203 = dma.done [#allocation4], 32
        $region40: #{tpu_custom_call.1} parent=35 // pred_fallthru
          _
        %204 = sfence
        %p205 = pneg %p35
        %p206 = pneg %p32
        %p207 = scmp.lt.s32.totalorder %s19, 3
        %s208 = scalar_select %p207, %s19, 3
        %s209 = smul.addr %s208, 8
        %s210 = smul.addr %s209, 8
        %s211 = scalar_lea.vmem %s1, %s210
        %p212 = pneg %p61
        %p213 = pneg %p58
        %p214 = scmp.lt.s32.totalorder %s19, 3
        %s215 = scalar_select %p214, %s19, 3
        %s216 = smul.addr %s215, 16
        %s217 = smul.addr %s216, 8
        %s218 = scalar_lea.vmem %s2, %s217
        %p219 = pneg %p87
        %p220 = pneg %p84
        %p221 = scmp.lt.s32.totalorder %s19, 3
        %s222 = scalar_select %p221, %s19, 3
        %s223 = smul.addr %s222, 16
        %s224 = smul.addr %s223, 8
        %s225 = scalar_lea.vmem %s3, %s224
        %p226 = pneg %p113
        %p227 = pneg %p110
        %p228 = pneg %p139
        %p229 = pneg %p136
        %s230 = sand.u32 %s126, 1
        %s231 = scalar_lea.sflag [#allocation3], %s230
        %s232 = sand.u32 %s126, 1
        %s233 = smul.addr %s232, 64
        %s234 = scalar_lea.vmem [#allocation5], %s233
        %p235 = scmp.lt.s32.totalorder %s19, 3
        %s236 = scalar_select %p235, %s19, 3
        %s237 = smul.addr %s236, 8
        %s238 = smul.addr %s237, 8
        %s239 = scalar_lea.vmem %s1, %s238
        %p240 = scmp.lt.s32.totalorder %s19, 3
        %s241 = scalar_select %p240, %s19, 3
        %s242 = smul.addr %s241, 16
        %s243 = smul.addr %s242, 8
        %s244 = scalar_lea.vmem %s2, %s243
        %p245 = scmp.lt.s32.totalorder %s19, 3
        %s246 = scalar_select %p245, %s19, 3
        %s247 = smul.addr %s246, 16
        %s248 = smul.addr %s247, 8
        %s249 = scalar_lea.vmem %s3, %s248
        %s250 = sld [smem:[#allocation2]]
        %v251 = vld [vmem:[%s244] sm:$0xff]
        %v252 = vld [vmem:[%s244 + $0x8] sm:$0xff]
        %v253 = vld [vmem:[%s244 + $0x10] sm:$0xff]
        %v254 = vld [vmem:[%s244 + $0x18] sm:$0xff]
        %v255 = vld [vmem:[%s244 + $0x20] sm:$0xff]
        %v256 = vld [vmem:[%s244 + $0x28] sm:$0xff]
        %v257 = vld [vmem:[%s244 + $0x30] sm:$0xff]
        %v258 = vld [vmem:[%s244 + $0x38] sm:$0xff]
        %v259 = vstv %s250
        %v260 = vmul.f32 %v259, %v251
        %v261 = vmul.f32 %v259, %v252
        %v262 = vmul.f32 %v259, %v253
        %v263 = vmul.f32 %v259, %v254
        %v264 = vmul.f32 %v259, %v255
        %v265 = vmul.f32 %v259, %v256
        %v266 = vmul.f32 %v259, %v257
        %v267 = vmul.f32 %v259, %v258
        %v268 = vadd.f32 %v260, 0.0
        %v269 = vadd.f32 %v261, 0.0
        %v270 = vadd.f32 %v262, 0.0
        %v271 = vadd.f32 %v263, 0.0
        %v272 = vadd.f32 %v264, 0.0
        %v273 = vadd.f32 %v265, 0.0
        %v274 = vadd.f32 %v266, 0.0
        %v275 = vadd.f32 %v267, 0.0
        %s276 = sld [smem:[#allocation2 + $0x80]]
        %v277 = vld [vmem:[%s249] sm:$0xff]
        %v278 = vld [vmem:[%s249 + $0x8] sm:$0xff]
        %v279 = vld [vmem:[%s249 + $0x10] sm:$0xff]
        %v280 = vld [vmem:[%s249 + $0x18] sm:$0xff]
        %v281 = vld [vmem:[%s249 + $0x20] sm:$0xff]
        %v282 = vld [vmem:[%s249 + $0x28] sm:$0xff]
        %v283 = vld [vmem:[%s249 + $0x30] sm:$0xff]
        %v284 = vld [vmem:[%s249 + $0x38] sm:$0xff]
        %v285 = vstv %s276
        %v286 = vmul.f32 %v285, %v277
        %v287 = vmul.f32 %v285, %v278
        %v288 = vmul.f32 %v285, %v279
        %v289 = vmul.f32 %v285, %v280
        %v290 = vmul.f32 %v285, %v281
        %v291 = vmul.f32 %v285, %v282
        %v292 = vmul.f32 %v285, %v283
        %v293 = vmul.f32 %v285, %v284
        %v294 = vadd.f32 %v286, 0.0
        %v295 = vadd.f32 %v287, 0.0
        %v296 = vadd.f32 %v288, 0.0
        %v297 = vadd.f32 %v289, 0.0
        %v298 = vadd.f32 %v290, 0.0
        %v299 = vadd.f32 %v291, 0.0
        %v300 = vadd.f32 %v292, 0.0
        %v301 = vadd.f32 %v293, 0.0
        %s302 = sld [smem:[#allocation2 + $0x1]]
        %s303 = scalar_lea.vmem %s244, 64
        %v304 = vld [vmem:[%s303] sm:$0xff]
        %v305 = vld [vmem:[%s303 + $0x8] sm:$0xff]
        %v306 = vld [vmem:[%s303 + $0x10] sm:$0xff]
        %v307 = vld [vmem:[%s303 + $0x18] sm:$0xff]
        %v308 = vld [vmem:[%s303 + $0x20] sm:$0xff]
        %v309 = vld [vmem:[%s303 + $0x28] sm:$0xff]
        %v310 = vld [vmem:[%s303 + $0x30] sm:$0xff]
        %v311 = vld [vmem:[%s303 + $0x38] sm:$0xff]
        %v312 = vstv %s302
        %v313 = vmul.f32 %v312, %v304
        %v314 = vmul.f32 %v312, %v305
        %v315 = vmul.f32 %v312, %v306
        %v316 = vmul.f32 %v312, %v307
        %v317 = vmul.f32 %v312, %v308
        %v318 = vmul.f32 %v312, %v309
        %v319 = vmul.f32 %v312, %v310
        %v320 = vmul.f32 %v312, %v311
        %v321 = vadd.f32 %v268, %v313
        %v322 = vadd.f32 %v269, %v314
        %v323 = vadd.f32 %v270, %v315
        %v324 = vadd.f32 %v271, %v316
        %v325 = vadd.f32 %v272, %v317
        %v326 = vadd.f32 %v273, %v318
        %v327 = vadd.f32 %v274, %v319
        %v328 = vadd.f32 %v275, %v320
        %s329 = sld [smem:[#allocation2 + $0x81]]
        %s330 = scalar_lea.vmem %s249, 64
        %v331 = vld [vmem:[%s330] sm:$0xff]
        %v332 = vld [vmem:[%s330 + $0x8] sm:$0xff]
        %v333 = vld [vmem:[%s330 + $0x10] sm:$0xff]
        %v334 = vld [vmem:[%s330 + $0x18] sm:$0xff]
        %v335 = vld [vmem:[%s330 + $0x20] sm:$0xff]
        %v336 = vld [vmem:[%s330 + $0x28] sm:$0xff]
        %v337 = vld [vmem:[%s330 + $0x30] sm:$0xff]
        %v338 = vld [vmem:[%s330 + $0x38] sm:$0xff]
        %v339 = vstv %s329
        %v340 = vmul.f32 %v339, %v331
        %v341 = vmul.f32 %v339, %v332
        %v342 = vmul.f32 %v339, %v333
        %v343 = vmul.f32 %v339, %v334
        %v344 = vmul.f32 %v339, %v335
        %v345 = vmul.f32 %v339, %v336
        %v346 = vmul.f32 %v339, %v337
        %v347 = vmul.f32 %v339, %v338
        %v348 = vadd.f32 %v294, %v340
        %v349 = vadd.f32 %v295, %v341
        %v350 = vadd.f32 %v296, %v342
        %v351 = vadd.f32 %v297, %v343
        %v352 = vadd.f32 %v298, %v344
        %v353 = vadd.f32 %v299, %v345
        %v354 = vadd.f32 %v300, %v346
        %v355 = vadd.f32 %v301, %v347
        %vm356 = vcmask 64512
        %v358 = vsel %vm356, %v321, 0
        %v361 = vsel %vm356, %v322, 0
        %v364 = vsel %vm356, %v323, 0
        %v367 = vsel %vm356, %v324, 0
        %v370 = vsel %vm356, %v325, 0
        %v373 = vsel %vm356, %v326, 0
        %v376 = vsel %vm356, %v327, 0
        %v379 = vsel %vm356, %v328, 0
        %v382 = vsel %vm356, %v348, 0
        %v385 = vsel %vm356, %v349, 0
        %v388 = vsel %vm356, %v350, 0
        %v391 = vsel %vm356, %v351, 0
        %v394 = vsel %vm356, %v352, 0
        %v397 = vsel %vm356, %v353, 0
        %v400 = vsel %vm356, %v354, 0
        %v403 = vsel %vm356, %v355, 0
        %405 = vmatprep.subr.mxu0 0.0
        %406 = vmatpush1.xpose.msra.mxu0 0.0
        %407 = vmatprep.subr.mxu0 0.0
        %408 = vmatpush1.xpose.msra.mxu0 0.0
        %409 = vmatprep.subr.mxu0 0.0
        %410 = vmatpush1.xpose.msra.mxu0 0.0
        %411 = vmatprep.subr.mxu0 0.0
        %412 = vmatpush1.xpose.msra.mxu0 0.0
        %413 = vmatprep.subr.mxu0 0.0
        %414 = vmatpush1.xpose.msra.mxu0 0.0
        %415 = vmatprep.subr.mxu0 0.0
        %416 = vmatpush1.xpose.msra.mxu0 0.0
        %417 = vmatprep.subr.mxu0 0.0
        %418 = vmatpush1.xpose.msra.mxu0 0.0
        %419 = vmatprep.subr.mxu0 0.0
        %420 = vmatpush1.xpose.msra.mxu0 0.0
        %421 = vmatprep.subr.mxu0 0.0
        %422 = vmatpush1.xpose.msra.mxu0 %v403
        %423 = vmatprep.subr.mxu0 0.0
        %424 = vmatpush1.xpose.msra.mxu0 %v400
        %425 = vmatprep.subr.mxu0 0.0
        %426 = vmatpush1.xpose.msra.mxu0 %v397
        %427 = vmatprep.subr.mxu0 0.0
        %428 = vmatpush1.xpose.msra.mxu0 %v394
        %429 = vmatprep.subr.mxu0 0.0
        %430 = vmatpush1.xpose.msra.mxu0 %v391
        %431 = vmatprep.subr.mxu0 0.0
        %432 = vmatpush1.xpose.msra.mxu0 %v388
        %433 = vmatprep.subr.mxu0 0.0
        %434 = vmatpush1.xpose.msra.mxu0 %v385
        %435 = vmatprep.subr.mxu0 0.0
        %436 = vmatpush1.xpose.msra.mxu0 %v382
        %437 = vmatprep.subr.mxu0 0.0
        %438 = vmatpush2.xpose.msra.mxu0 0.0
        %439 = vmatprep.subr.mxu0 0.0
        %440 = vmatpush2.xpose.msra.mxu0 0.0
        %441 = vmatprep.subr.mxu0 0.0
        %442 = vmatpush2.xpose.msra.mxu0 0.0
        %443 = vmatprep.subr.mxu0 0.0
        %444 = vmatpush2.xpose.msra.mxu0 0.0
        %445 = vmatprep.subr.mxu0 0.0
        %446 = vmatpush2.xpose.msra.mxu0 0.0
        %447 = vmatprep.subr.mxu0 0.0
        %448 = vmatpush2.xpose.msra.mxu0 0.0
        %449 = vmatprep.subr.mxu0 0.0
        %450 = vmatpush2.xpose.msra.mxu0 0.0
        %451 = vmatprep.subr.mxu0 0.0
        %452 = vmatpush2.xpose.msra.mxu0 0.0
        %453 = vmatprep.subr.mxu0 0.0
        %454 = vmatpush2.xpose.msra.mxu0 0.0
        %455 = vmatprep.subr.mxu0 0.0
        %456 = vmatpush2.xpose.msra.mxu0 0.0
        %457 = vmatprep.subr.mxu0 0.0
        %458 = vmatpush2.xpose.msra.mxu0 0.0
        %459 = vmatprep.subr.mxu0 0.0
        %460 = vmatpush2.xpose.msra.mxu0 0.0
        %461 = vmatprep.subr.mxu0 0.0
        %462 = vmatpush2.xpose.msra.mxu0 0.0
        %463 = vmatprep.subr.mxu0 0.0
        %464 = vmatpush2.xpose.msra.mxu0 0.0
        %465 = vmatprep.subr.mxu0 0.0
        %466 = vmatpush2.xpose.msra.mxu0 0.0
        %467 = vmatprep.subr.mxu0 0.0
        %468 = vmatpush2.xpose.msra.mxu0 0.0
        %469 = vmatprep.mubr.f32.mxu0 0.0
        %470 = vmatmul.mubr.f32.gmra.mxu0 %v358
        %v471 = vpop.f32.mrf.mxu0
        %v472 = vadd.f32 0.0, %v471
        %v473 = vpop.f32.mrf.mxu0
        %474 = vmatprep.mubr.f32.mxu0 0.0
        %475 = vmatmul.mubr.f32.gmra.mxu0 %v361
        %v476 = vpop.f32.mrf.mxu0
        %v477 = vadd.f32 0.0, %v476
        %v478 = vpop.f32.mrf.mxu0
        %479 = vmatprep.mubr.f32.mxu0 0.0
        %480 = vmatmul.mubr.f32.gmra.mxu0 %v364
        %v481 = vpop.f32.mrf.mxu0
        %v482 = vadd.f32 0.0, %v481
        %v483 = vpop.f32.mrf.mxu0
        %484 = vmatprep.mubr.f32.mxu0 0.0
        %485 = vmatmul.mubr.f32.gmra.mxu0 %v367
        %v486 = vpop.f32.mrf.mxu0
        %v487 = vadd.f32 0.0, %v486
        %v488 = vpop.f32.mrf.mxu0
        %489 = vmatprep.mubr.f32.mxu0 0.0
        %490 = vmatmul.mubr.f32.gmra.mxu0 %v370
        %v491 = vpop.f32.mrf.mxu0
        %v492 = vadd.f32 0.0, %v491
        %v493 = vpop.f32.mrf.mxu0
        %494 = vmatprep.mubr.f32.mxu0 0.0
        %495 = vmatmul.mubr.f32.gmra.mxu0 %v373
        %v496 = vpop.f32.mrf.mxu0
        %v497 = vadd.f32 0.0, %v496
        %v498 = vpop.f32.mrf.mxu0
        %499 = vmatprep.mubr.f32.mxu0 0.0
        %500 = vmatmul.mubr.f32.gmra.mxu0 %v376
        %v501 = vpop.f32.mrf.mxu0
        %v502 = vadd.f32 0.0, %v501
        %v503 = vpop.f32.mrf.mxu0
        %504 = vmatprep.mubr.f32.mxu0 0.0
        %505 = vmatmul.mubr.f32.gmra.mxu0 %v379
        %v506 = vpop.f32.mrf.mxu0
        %v507 = vadd.f32 0.0, %v506
        %v508 = vpop.f32.mrf.mxu0
        %509 = vdwg.mxu0
        %v510 = vld [vmem:[%s239] sm:$0xff]
        %v511 = vld [vmem:[%s239 + $0x8] sm:$0xff]
        %v512 = vld [vmem:[%s239 + $0x10] sm:$0xff]
        %v513 = vld [vmem:[%s239 + $0x18] sm:$0xff]
        %v514 = vld [vmem:[%s239 + $0x20] sm:$0xff]
        %v515 = vld [vmem:[%s239 + $0x28] sm:$0xff]
        %v516 = vld [vmem:[%s239 + $0x30] sm:$0xff]
        %v517 = vld [vmem:[%s239 + $0x38] sm:$0xff]
        %v518 = vadd.f32 %v510, %v472
        %v519 = vadd.f32 %v511, %v477
        %v520 = vadd.f32 %v512, %v482
        %v521 = vadd.f32 %v513, %v487
        %v522 = vadd.f32 %v514, %v492
        %v523 = vadd.f32 %v515, %v497
        %v524 = vadd.f32 %v516, %v502
        %v525 = vadd.f32 %v517, %v507
        %vm526 = vcmask 523264
        %527 = vst.msk [vmem:[%s234] sm:$0xff] %vm526, %v518
        %528 = vst.msk [vmem:[%s234 + $0x8] sm:$0xff] %vm526, %v519
        %529 = vst.msk [vmem:[%s234 + $0x10] sm:$0xff] %vm526, %v520
        %530 = vst.msk [vmem:[%s234 + $0x18] sm:$0xff] %vm526, %v521
        %531 = vst.msk [vmem:[%s234 + $0x20] sm:$0xff] %vm526, %v522
        %532 = vst.msk [vmem:[%s234 + $0x28] sm:$0xff] %vm526, %v523
        %533 = vst.msk [vmem:[%s234 + $0x30] sm:$0xff] %vm526, %v524
        %534 = vst.msk [vmem:[%s234 + $0x38] sm:$0xff] %vm526, %v525
        %s535 = sand.u32 %s126, 1
        %s536 = scalar_lea.sflag [#allocation3], %s535
        %s537 = sand.u32 %s126, 1
        %s538 = smul.addr %s537, 64
        %s539 = scalar_lea.vmem [#allocation5], %s538
        // Predicated region
        $region41: #{tpu_custom_call.1} parent=35 // pred_check
          %p540 = pneg %p136
        $region42: #{tpu_custom_call.1} parent=35 // pred_check_branch
          %542 = sbr.rel (%p540) target = $region44
        $region43: #{tpu_custom_call.1} parent=35 // pred_region
          %s544 = ssub.s32 1024, 1024
          %545 = vsyncadd %s536, %s544
          %s546 = smul.addr %s19, 8
          %s547 = smul.addr %s546, 128
          %s548 = scalar_lea.hbm %s4, %s547
          %s549 = sshll.u32 %s539, 4
          %s550 = int_to_ptr.vmem [resolvable:$true] %s549
          %555 = dma.vmem_to_hbm [thread:$0]  %s550, 1024, %s548, %s536, 128, 128, 8
        $region44: #{tpu_custom_call.1} parent=35 // pred_fallthru
          _
      $region36: #{tpu_custom_call.1} parent=5 // pred_fallthru
        _
      %p556 = scmp.le.s32.totalorder 2, %s14
      // Predicated region
      $region45: #{tpu_custom_call.1} parent=5 // pred_check
        %p557 = pneg %p556
      $region46: #{tpu_custom_call.1} parent=5 // pred_check_branch
        %559 = sbr.rel (%p557) target = $region48
      $region47: #{tpu_custom_call.1} parent=5 // pred_region
        %s560 = ssub.s32 %s14, 2
        // Predicated region
        $region49: #{tpu_custom_call.1} parent=47 // pred_check
          %p561 = pneg %p142
        $region50: #{tpu_custom_call.1} parent=47 // pred_check_branch
          %563 = sbr.rel (%p561) target = $region52
        $region51: #{tpu_custom_call.1} parent=47 // pred_region
          %s564 = sand.u32 %s127, 1
          %s565 = scalar_lea.sflag [#allocation3], %s564
          %s566 = sand.u32 %s127, 1
          %s567 = smul.addr %s566, 64
          %s568 = scalar_lea.vmem [#allocation5], %s567
          %569 = dma.done %s565, 1024
        $region52: #{tpu_custom_call.1} parent=47 // pred_fallthru
          _
      $region48: #{tpu_custom_call.1} parent=5 // pred_fallthru
        _
    $region6: #{tpu_custom_call.1} parent=1 // loop_footer
      %s18 = sadd.s32 1, %s14
    $region7: #{tpu_custom_call.1} parent=1 // loop_footer_branch
      %13 = sbr.rel target = $region3
    $region8: #{tpu_custom_call.1} parent=1 // loop_exit
      _
    %570 = vsyncpa [#allocation3], 1
    %s571 = scalar_lea.sflag [#allocation3], 1
    %572 = vsyncpa %s571, 1
    %573 = vsyncpa [#allocation4], 1
    %s574 = scalar_lea.sflag [#allocation4], 1
    %575 = vsyncpa %s574, 1

</llo_original>
